<compile_context>
chip_gen: v7x
topology: tpu7x:2x2x1
jax: 0.10.0
libtpu: 0.0.40
codegen_flags: <defaults>
</compile_context>

<pallas_src>
import functools
import math

import jax
import jax.numpy as jnp
from jax import lax
from jax.experimental import pallas as pl
from jax.experimental.pallas import tpu as pltpu


# ----------------------------------------------------------------------------
# Pallas kernel: im2col conv1d (single MXU matmul) + bias + ReLU, fused
# ----------------------------------------------------------------------------
def _conv1d_relu_kernel(x_ref, w_ref, b_ref, o_ref, *, ksize, l_out):
    # x_ref: (TB, L_pad, Cin)   w_ref: (K*Cin, Cout_p)   b_ref: (1, Cout_p)
    # o_ref: (TB, L_out, Cout_p)
    tb, _, cin = x_ref.shape
    cout = w_ref.shape[-1]

    x = x_ref[...]                                            # (TB, L_pad, Cin)
    # im2col: K statically shifted windows, concatenated along the lane axis.
    if ksize > 1:
        xcol = jnp.concatenate([x[:, k:k + l_out, :] for k in range(ksize)],
                               axis=-1)                       # (TB, L_out, K*Cin)
    else:
        xcol = x[:, :l_out, :]
    xcol = xcol.reshape(tb * l_out, ksize * cin)              # M = TB*L_out rows

    acc = jnp.dot(xcol, w_ref[...], preferred_element_type=jnp.float32)
    acc = jnp.maximum(acc + b_ref[...], 0.0)                  # fused bias + ReLU (f32)
    o_ref[...] = acc.reshape(tb, l_out, cout).astype(o_ref.dtype)


# ----------------------------------------------------------------------------
# Tiling / VMEM helpers
# ----------------------------------------------------------------------------
def _step_vmem_bytes(tb, l_pad, l_out, cin, k, cout_p, x_isz, o_isz):
    x_blk = tb * l_pad * cin * x_isz
    o_blk = tb * l_out * cout_p * o_isz
    col = tb * l_out * k * cin * x_isz            # im2col temporary
    acc = tb * l_out * cout_p * 4                 # f32 accumulator
    wgt = k * cin * cout_p * x_isz + cout_p * 4   # resident weight + bias
    return 2 * (x_blk + o_blk) + col + acc + wgt  # 2x: double-buffered blocks


def _pick_batch_tile(B, l_pad, l_out, cin, k, cout_p, x_isz, o_isz,
                     budget_bytes=12 * 2 ** 20):
    """Largest batch tile whose double-buffered blocks fit the VMEM budget,
    while keeping grid >= 2 steps (when B >= 2) so both v7x TensorCores work."""
    for tb in sorted((d for d in range(1, B + 1) if B % d == 0), reverse=True):
        if B >= 2 and tb == B:
            continue
        if _step_vmem_bytes(tb, l_pad, l_out, cin, k, cout_p, x_isz, o_isz) <= budget_bytes:
            return tb
    return 1


# ----------------------------------------------------------------------------
# Fused Conv1d + bias + ReLU (channels-last)
# ----------------------------------------------------------------------------
def conv1d_relu(feature_blc, weight, bias, *, padding, batch_tile=None,
                compute_dtype=None, out_dtype=None, lane_pad=128):
    """feature_blc: [B, L, Cin]; weight: [Cout, Cin, K] (torch); bias: [Cout].
    Returns [B, L_out, Cout] with L_out = L + 2*padding - K + 1."""
    B, L, Cin = feature_blc.shape
    Cout, Cin_w, K = weight.shape
    assert Cin_w == Cin
    l_pad = L + 2 * padding
    l_out = l_pad - K + 1
    out_dtype = out_dtype or feature_blc.dtype

    # Lane-pad Cout to a multiple of 128 -> unmasked lane-dense output stores.
    cout_p = ((Cout + lane_pad - 1) // lane_pad) * lane_pad

    # One-time glue (fuses with the caller's layout transpose in XLA).
    x_pad = jnp.pad(feature_blc, ((0, 0), (padding, padding), (0, 0)))
    w_mat = jnp.transpose(weight, (2, 1, 0)).reshape(K * Cin, Cout)   # (K*Cin, Cout)
    w_mat = jnp.pad(w_mat, ((0, 0), (0, cout_p - Cout)))
    bias2 = jnp.pad(bias, (0, cout_p - Cout)).reshape(1, cout_p).astype(jnp.float32)

    if compute_dtype is not None:          # bf16 MXU feed; accumulation stays f32
        x_pad = x_pad.astype(compute_dtype)
        w_mat = w_mat.astype(compute_dtype)

    x_isz = jnp.dtype(x_pad.dtype).itemsize
    o_isz = jnp.dtype(out_dtype).itemsize

    if batch_tile is None:
        batch_tile = _pick_batch_tile(B, l_pad, l_out, Cin, K, cout_p, x_isz, o_isz)
    tb = batch_tile
    assert B % tb == 0
    grid = (B // tb,)

    est_bytes = _step_vmem_bytes(tb, l_pad, l_out, Cin, K, cout_p, x_isz, o_isz)
    # Raise the scoped-VMEM limit above the v5e 16 MiB default, stay < v7x 64 MiB.
    vmem_limit = int(min(56 * 2 ** 20, max(32 * 2 ** 20, 2 * est_bytes)))

    flops = 2 * B * l_out * K * Cin * cout_p
    bytes_accessed = (x_pad.size * x_isz + w_mat.size * x_isz + bias2.size * 4
                      + B * l_out * cout_p * o_isz)

    kernel = functools.partial(_conv1d_relu_kernel, ksize=K, l_out=l_out)

    out = pl.pallas_call(
        kernel,
        out_shape=jax.ShapeDtypeStruct((B, l_out, cout_p), out_dtype),
        grid_spec=pltpu.PrefetchScalarGridSpec(
            num_scalar_prefetch=0,
            grid=grid,
            in_specs=[
                pl.BlockSpec((tb, l_pad, Cin), lambda i: (i, 0, 0)),    # padded feature
                pl.BlockSpec((K * Cin, cout_p), lambda i: (0, 0)),      # im2col weights (shared)
                pl.BlockSpec((1, cout_p), lambda i: (0, 0)),            # bias (shared)
            ],
            out_specs=pl.BlockSpec((tb, l_out, cout_p), lambda i: (i, 0, 0)),
        ),
        compiler_params=pltpu.CompilerParams(
            dimension_semantics=("parallel",),
            vmem_limit_bytes=vmem_limit),
        cost_estimate=pl.CostEstimate(flops=flops, transcendentals=0,
                                      bytes_accessed=bytes_accessed),
    )(x_pad, w_mat, bias2)

    return out[:, :, :Cout] if cout_p != Cout else out


def _fuse_convs(convs, k_fused, pad_fused):
    """Zero-pad each sub-conv's taps into a shared K=k_fused / padding=pad_fused
    window (tap offset = pad_fused - p; this also reproduces the intended trailing
    sequence zero for the even kernels of group5) and stack along Cout, so every
    group conv runs inside ONE pallas_call."""
    w_parts, b_parts = [], []
    for w, b, p in convs:
        cout_g, cin, k = w.shape
        off = pad_fused - p
        assert 0 <= off and off + k <= k_fused
        w5 = jnp.zeros((cout_g, cin, k_fused), w.dtype).at[:, :, off:off + k].set(w)
        w_parts.append(w5)
        b_parts.append(b)
    return jnp.concatenate(w_parts, axis=0), jnp.concatenate(b_parts, axis=0)


# ----------------------------------------------------------------------------
# Module-level forward (matches layers.Conv1D.forward)
# ----------------------------------------------------------------------------
def conv1d_forward_channels_last(x_blc, params, cnn_method, *, compute_dtype=None):
    """x_blc: [B, L, Cin] channels-last. Returns [B, L_out, Cout_total]."""
    if cnn_method == 'naive':
        w, b = params['conv']
        K = w.shape[2]
        return conv1d_relu(x_blc, w, b, padding=(K - 1) // 2,
                           compute_dtype=compute_dtype)
    if cnn_method == 'group3':
        convs = [(params['conv1'][0], params['conv1'][1], 0),
                 (params['conv2'][0], params['conv2'][1], 1),
                 (params['conv3'][0], params['conv3'][1], 2)]
    else:  # 'group5'
        # TODO(synk): the literal torch code cats a [B, Cin, 1] zero tensor on dim=1
        # (a shape bug unless L == 1); as before we implement the intended behavior:
        # one trailing sequence zero so the even-kernel convs (k=2, k=4) keep length L.
        convs = [(params[f'conv{i}'][0], params[f'conv{i}'][1], p)
                 for i, p in ((1, 0), (2, 0), (3, 1), (4, 1), (5, 2))]
    W, Bv = _fuse_convs(convs, k_fused=5, pad_fused=2)
    return conv1d_relu(x_blc, W, Bv, padding=2, compute_dtype=compute_dtype)


def conv1d_forward(feature, params, cnn_method, *, compute_dtype=None):
    """feature: [B, Cin, L] (torch layout). Returns [B, Cout_total, L_out].
    (Channels-last callers should use conv1d_forward_channels_last directly and
    skip these two layout-transpose HBM passes.)"""
    x = jnp.transpose(feature, (0, 2, 1))
    y = conv1d_forward_channels_last(x, params, cnn_method,
                                     compute_dtype=compute_dtype)
    return jnp.transpose(y, (0, 2, 1))


def init_conv1d_params(key, cnn_method, in_channels, cnn_kernel_num,
                       cnn_window_size=3):
    """Deterministic torch-style Conv1d init (uniform +/- 1/sqrt(fan_in))."""
    def mk(k, cout, ksize):
        kw, kb = jax.random.split(k)
        bound = 1.0 / math.sqrt(in_channels * ksize)
        w = jax.random.uniform(kw, (cout, in_channels, ksize),
                               minval=-bound, maxval=bound, dtype=jnp.float32)
        b = jax.random.uniform(kb, (cout,),
                               minval=-bound, maxval=bound, dtype=jnp.float32)
        return w, b

    if cnn_method == 'naive':
        return {'conv': mk(key, cnn_kernel_num, cnn_window_size)}
    elif cnn_method == 'group3':
        assert cnn_kernel_num % 3 == 0
        ks = jax.random.split(key, 3)
        return {'conv1': mk(ks[0], cnn_kernel_num // 3, 1),
                'conv2': mk(ks[1], cnn_kernel_num // 3, 3),
                'conv3': mk(ks[2], cnn_kernel_num // 3, 5)}
    else:
        assert cnn_kernel_num % 5 == 0
        ks = jax.random.split(key, 5)
        return {f'conv{i + 1}': mk(ks[i], cnn_kernel_num // 5, i + 1)
                for i in range(5)}


# ----------------------------------------------------------------------------
# Pure-JAX reference
# ----------------------------------------------------------------------------
def _conv1d_ref(x_bcl, w, b, padding, extra_right_pad=0):
    if extra_right_pad:
        x_bcl = jnp.pad(x_bcl, ((0, 0), (0, 0), (0, extra_right_pad)))
    y = lax.conv_general_dilated(x_bcl, w, window_strides=(1,),
                                 padding=[(padding, padding)],
                                 dimension_numbers=('NCH', 'OIH', 'NCH'))
    return y + b[None, :, None]


def conv1d_forward_reference(feature, params, cnn_method):
    if cnn_method == 'naive':
        w, b = params['conv']
        K = w.shape[2]
        return jnp.maximum(_conv1d_ref(feature, w, b, (K - 1) // 2), 0.0)
    elif cnn_method == 'group3':
        outs = [_conv1d_ref(feature, *params[n], p)
                for n, p in (('conv1', 0), ('conv2', 1), ('conv3', 2))]
        return jnp.maximum(jnp.concatenate(outs, axis=1), 0.0)
    else:
        outs = [_conv1d_ref(feature, *params[n], p, extra)
                for n, p, extra in (('conv1', 0, 0), ('conv2', 0, 1), ('conv3', 1, 0),
                                    ('conv4', 1, 1), ('conv5', 2, 0))]
        return jnp.maximum(jnp.concatenate(outs, axis=1), 0.0)


# ----------------------------------------------------------------------------
# Demo / correctness check
# ----------------------------------------------------------------------------
if __name__ == "__main__":
    key = jax.random.PRNGKey(0)
    B, Cin, L = 2, 32, 16

    k_x, k_n, k_g3, k_g5 = jax.random.split(key, 4)
    feature = jax.random.normal(k_x, (B, Cin, L), dtype=jnp.float32)

    # naive: Conv1d(32 -> 64, window 3) + ReLU
    p_naive = init_conv1d_params(k_n, 'naive', Cin, cnn_kernel_num=64,
                                 cnn_window_size=3)
    out_naive = jax.block_until_ready(conv1d_forward(feature, p_naive, 'naive'))
    ref_naive = conv1d_forward_reference(feature, p_naive, 'naive')
    assert out_naive.shape == (B, 64, L)
    assert jnp.allclose(out_naive, ref_naive, atol=1e-4, rtol=1e-4), "naive mismatch"

    # group3: three windows (1,3,5), 48 total channels, fused into one pallas_call
    p_g3 = init_conv1d_params(k_g3, 'group3', Cin, cnn_kernel_num=48)
    out_g3 = jax.block_until_ready(conv1d_forward(feature, p_g3, 'group3'))
    ref_g3 = conv1d_forward_reference(feature, p_g3, 'group3')
    assert out_g3.shape == (B, 48, L)
    assert jnp.allclose(out_g3, ref_g3, atol=1e-4, rtol=1e-4), "group3 mismatch"

    # group5: five windows (1..5), 40 total channels, fused into one pallas_call
    p_g5 = init_conv1d_params(k_g5, 'group5', Cin, cnn_kernel_num=40)
    out_g5 = jax.block_until_ready(conv1d_forward(feature, p_g5, 'group5'))
    ref_g5 = conv1d_forward_reference(feature, p_g5, 'group5')
    assert out_g5.shape == (B, 40, L)
    assert jnp.allclose(out_g5, ref_g5, atol=1e-4, rtol=1e-4), "group5 mismatch"

    # bf16 MXU feed (f32 accumulation) — memory-bound fast path, loose tolerance
    out_bf16 = jax.block_until_ready(
        conv1d_forward(feature, p_naive, 'naive', compute_dtype=jnp.bfloat16))
    assert jnp.allclose(out_bf16, ref_naive, atol=5e-2, rtol=5e-2), "bf16 mismatch"

    print("KERNEL_OK")
</pallas_src>

<mosaic_0001>
module attributes {stable_mosaic.version = 11 : i64} {
  func.func @_conv1d_relu_kernel(%arg0: i32, %arg1: memref<1x18x32xf32, #tpu.memory_space<vmem>>, %arg2: memref<96x128xf32, #tpu.memory_space<vmem>>, %arg3: memref<1x128xf32, #tpu.memory_space<vmem>>, %arg4: memref<1x16x128xf32, #tpu.memory_space<vmem>>) attributes {dimension_semantics = [#tpu.dimension_semantics<parallel>], iteration_bounds = array<i64: 2>, scalar_prefetch = 0 : i64, scratch_operands = 0 : i64, tpu.core_type = #tpu.core_type<tc>, window_params = [{transform_indices = @transform_0, window_bounds = array<i64: 1, 18, 32>}, {pipeline_mode = #tpu.pipeline_mode<synchronous>, transform_indices = @transform_1, window_bounds = array<i64: 96, 128>}, {pipeline_mode = #tpu.pipeline_mode<synchronous>, transform_indices = @transform_2, window_bounds = array<i64: 1, 128>}, {transform_indices = @transform_3, window_bounds = array<i64: 1, 16, 128>}]} {
    %c0 = arith.constant 0 : index
    %c0_0 = arith.constant 0 : index
    %c0_1 = arith.constant 0 : index
    %0 = vector.load %arg1[%c0, %c0_0, %c0_1] : memref<1x18x32xf32, #tpu.memory_space<vmem>>, vector<1x18x32xf32>
    %1 = vector.extract_strided_slice %0 {offsets = [0, 0, 0], sizes = [1, 16, 32], strides = [1, 1, 1]} : vector<1x18x32xf32> to vector<1x16x32xf32>
    %2 = vector.extract_strided_slice %0 {offsets = [0, 1, 0], sizes = [1, 16, 32], strides = [1, 1, 1]} : vector<1x18x32xf32> to vector<1x16x32xf32>
    %3 = vector.extract_strided_slice %0 {offsets = [0, 2, 0], sizes = [1, 16, 32], strides = [1, 1, 1]} : vector<1x18x32xf32> to vector<1x16x32xf32>
    %4 = tpu.concatenate %1, %2, %3 in 2 : vector<1x16x32xf32>, vector<1x16x32xf32>, vector<1x16x32xf32> -> vector<1x16x96xf32>
    %5 = vector.shape_cast %4 : vector<1x16x96xf32> to vector<16x96xf32>
    %c0_2 = arith.constant 0 : index
    %c0_3 = arith.constant 0 : index
    %6 = vector.load %arg2[%c0_2, %c0_3] : memref<96x128xf32, #tpu.memory_space<vmem>>, vector<96x128xf32>
    %cst = arith.constant dense<0.000000e+00> : vector<16x128xf32>
    %7 = tpu.matmul %5, %6, %cst {dimension_numbers = #tpu.dot_dimension_numbers<[1], [0], [0], [1], [0, 0, 1, 1], [], []>} : vector<16x96xf32>, vector<96x128xf32>, vector<16x128xf32> -> vector<16x128xf32>
    %c0_4 = arith.constant 0 : index
    %c0_5 = arith.constant 0 : index
    %8 = vector.load %arg3[%c0_4, %c0_5] : memref<1x128xf32, #tpu.memory_space<vmem>>, vector<1x128xf32>
    %9 = vector.broadcast %8 : vector<1x128xf32> to vector<16x128xf32>
    %10 = arith.addf %7, %9 : vector<16x128xf32>
    %cst_6 = arith.constant 0.000000e+00 : f32
    %11 = vector.broadcast %cst_6 : f32 to vector<16x128xf32>
    %12 = arith.maximumf %10, %11 : vector<16x128xf32>
    %13 = vector.shape_cast %12 : vector<16x128xf32> to vector<1x16x128xf32>
    %c0_7 = arith.constant 0 : index
    %c0_8 = arith.constant 0 : index
    %c0_9 = arith.constant 0 : index
    %14 = vector.load %arg4[%c0_7, %c0_8, %c0_9] : memref<1x16x128xf32, #tpu.memory_space<vmem>>, vector<1x16x128xf32>
    tpu.vector_store %arg4[%c0_7, %c0_8, %c0_9], %13 {strides = array<i32>} : memref<1x16x128xf32, #tpu.memory_space<vmem>>, vector<1x16x128xf32>,
    return
  }
  func.func @transform_0(%arg0: i32) -> (i32, i32, i32) {
    %c0_i32 = arith.constant 0 : i32
    %c0_i32_0 = arith.constant 0 : i32
    %c0_i32_1 = arith.constant 0 : i32
    return %arg0, %c0_i32, %c0_i32_0 : i32, i32, i32
  }
  func.func @transform_1(%arg0: i32) -> (i32, i32) {
    %c0_i32 = arith.constant 0 : i32
    %c0_i32_0 = arith.constant 0 : i32
    %c0_i32_1 = arith.constant 0 : i32
    return %c0_i32, %c0_i32_0 : i32, i32
  }
  func.func @transform_2(%arg0: i32) -> (i32, i32) {
    %c0_i32 = arith.constant 0 : i32
    %c0_i32_0 = arith.constant 0 : i32
    %c0_i32_1 = arith.constant 0 : i32
    return %c0_i32, %c0_i32_0 : i32, i32
  }
  func.func @transform_3(%arg0: i32) -> (i32, i32, i32) {
    %c0_i32 = arith.constant 0 : i32
    %c0_i32_0 = arith.constant 0 : i32
    %c0_i32_1 = arith.constant 0 : i32
    return %arg0, %c0_i32, %c0_i32_0 : i32, i32, i32
  }
}

</mosaic_0001>

<llo_original>
// kernel: tpu_custom_call.1
$region0: #{tpu_custom_call.1}
  #allocation0 [shape = 'u32[]', space=smem, size = 0x4, offset = 0x4, fixed_abs, tag = 'smem constant byte address 0x4 - core index']
  #allocation1 [shape = 'u32[144,128]{1,0:T(1,128)}', space=vmem, size = 0x12000, scoped, tag = 'internal scratch']
  %s0 = inlined_call_operand.vmem [shape: f32[2,18,32], index: 0, kind: input, shape index: {}]
  %s1 = inlined_call_operand.hbm [shape: f32[96,128], index: 1, kind: input, shape index: {}]
  %s2 = inlined_call_operand.vmem [shape: f32[1,128], index: 2, kind: input, shape index: {}]
  %s3 = inlined_call_operand.hbm [shape: f32[2,16,128], index: 3, kind: output, shape index: {}]
  %s4 = sld [smem:[#allocation0]]
  $region49: #{tpu_custom_call.1} parent=0
    _
  %s6 = ssub.s32 1, %s4
  %s7 = scalar_select 0, %s6, %s4
  $region1: #{tpu_custom_call.1} parent=0
    #allocation2 [shape = 'u8[49152]{0}', space=vmem, size = 0xc000, scoped, tag = 'input window, operand 1, single buffered']
    #allocation3 [shape = 's32[2]{0}', space=sflag, size = 0x8, scoped, tag = 'scoped memory for tpu_custom_call.1']
    #allocation4 [shape = 's32[2]{0}', space=sflag, size = 0x8, scoped, tag = 'scoped memory for tpu_custom_call.1']
    #allocation5 [shape = 'u8[16384]{0}', space=vmem, size = 0x4000, scoped, tag = 'output window, operand 0']
    %8 = vsyncpa [#allocation3], 0
    %9 = vsyncpa [#allocation4], 0
    %s10 = scalar_lea.sflag [#allocation4], 1
    %11 = vsyncpa %s10, 0
    loop: start=0, step=1, limit=4
    $region2: #{tpu_custom_call.1} parent=1 // loop_pre_header
      _
    $region3: #{tpu_custom_call.1} parent=1 // loop_header
      %s13 = sphi 0, %s17
      %p14 = scmp.ge.s32.totalorder %s13, 4
      %s23 = sphi 0, %s25
      %s26 = sphi 0, %s23
      %s27 = sphi 0, %s26
      %s43 = sphi 0, %s27
      %s47 = sphi 0, %s47
      %s49 = sphi 0, %s47
      %s50 = sphi 0, %s49
      %s64 = sphi 0, %s50
      %s68 = sphi 0, %s68
      %s70 = sphi 0, %s68
      %s71 = sphi 0, %s70
      %s85 = sphi 0, %s71
      %s91 = sphi 0, %s93
      %s94 = sphi 0, %s91
      %s95 = sphi 0, %s94
      %s111 = sphi 0, %s95
    $region4: #{tpu_custom_call.1} parent=1 // loop_header_branch
      %16 = sbr.rel (%p14) target = $region8
    $region5: #{tpu_custom_call.1} parent=1 // loop_body
      %s18 = ssub.s32 %s13, 1
      %s19 = ssub.s32 %s13, 2
      %s20 = sadd.s32 %s13, 1
      %s21 = ssub.s32 %s13, %s20
      %p22 = scmp.eq.s32.totalorder %s21, 0
      %s24 = sadd.s32 %s23, 1
      %s25 = scalar_select %p22, %s23, %s24
      %p28 = pneg %p22
      %p29 = scmp.eq.s32.totalorder %s13, 1
      %p30 = por %p28, %p29
      %p31 = scmp.ne.s32.totalorder %s23, %s26
      %p32 = scmp.eq.s32.totalorder %s13, 0
      %p33 = por %p31, %p32
      %p34 = scmp.ne.s32.totalorder %s23, %s26
      %p35 = scmp.eq.s32.totalorder %s18, 1
      %p36 = por %p34, %p35
      %p37 = scmp.ne.s32.totalorder %s26, %s27
      %p38 = scmp.eq.s32.totalorder %s18, 0
      %p39 = por %p37, %p38
      %p40 = scmp.ne.s32.totalorder %s26, %s27
      %p41 = scmp.eq.s32.totalorder %s19, 1
      %p42 = por %p40, %p41
      %p44 = scmp.ne.s32.totalorder %s27, %s43
      %p45 = scmp.eq.s32.totalorder %s19, 0
      %p46 = por %p44, %p45
      %s48 = sadd.s32 %s47, 1
      %p51 = scmp.eq.s32.totalorder %s13, 1
      %p52 = scmp.ne.s32.totalorder %s47, %s49
      %p53 = scmp.eq.s32.totalorder %s13, 0
      %p54 = por %p52, %p53
      %p55 = scmp.ne.s32.totalorder %s47, %s49
      %p56 = scmp.eq.s32.totalorder %s18, 1
      %p57 = por %p55, %p56
      %p58 = scmp.ne.s32.totalorder %s49, %s50
      %p59 = scmp.eq.s32.totalorder %s18, 0
      %p60 = por %p58, %p59
      %p61 = scmp.ne.s32.totalorder %s49, %s50
      %p62 = scmp.eq.s32.totalorder %s19, 1
      %p63 = por %p61, %p62
      %p65 = scmp.ne.s32.totalorder %s50, %s64
      %p66 = scmp.eq.s32.totalorder %s19, 0
      %p67 = por %p65, %p66
      %s69 = sadd.s32 %s68, 1
      %p72 = scmp.eq.s32.totalorder %s13, 1
      %p73 = scmp.ne.s32.totalorder %s68, %s70
      %p74 = scmp.eq.s32.totalorder %s13, 0
      %p75 = por %p73, %p74
      %p76 = scmp.ne.s32.totalorder %s68, %s70
      %p77 = scmp.eq.s32.totalorder %s18, 1
      %p78 = por %p76, %p77
      %p79 = scmp.ne.s32.totalorder %s70, %s71
      %p80 = scmp.eq.s32.totalorder %s18, 0
      %p81 = por %p79, %p80
      %p82 = scmp.ne.s32.totalorder %s70, %s71
      %p83 = scmp.eq.s32.totalorder %s19, 1
      %p84 = por %p82, %p83
      %p86 = scmp.ne.s32.totalorder %s71, %s85
      %p87 = scmp.eq.s32.totalorder %s19, 0
      %p88 = por %p86, %p87
      %s89 = ssub.s32 %s13, %s20
      %p90 = scmp.eq.s32.totalorder %s89, 0
      %s92 = sadd.s32 %s91, 1
      %s93 = scalar_select %p90, %s91, %s92
      %p96 = pneg %p90
      %p97 = scmp.eq.s32.totalorder %s13, 1
      %p98 = por %p96, %p97
      %p99 = scmp.ne.s32.totalorder %s91, %s94
      %p100 = scmp.eq.s32.totalorder %s13, 0
      %p101 = por %p99, %p100
      %p102 = scmp.ne.s32.totalorder %s91, %s94
      %p103 = scmp.eq.s32.totalorder %s18, 1
      %p104 = por %p102, %p103
      %p105 = scmp.ne.s32.totalorder %s94, %s95
      %p106 = scmp.eq.s32.totalorder %s18, 0
      %p107 = por %p105, %p106
      %p108 = scmp.ne.s32.totalorder %s94, %s95
      %p109 = scmp.eq.s32.totalorder %s19, 1
      %p110 = por %p108, %p109
      %p112 = scmp.ne.s32.totalorder %s95, %s111
      %p113 = scmp.eq.s32.totalorder %s19, 0
      %p114 = por %p112, %p113
      %p115 = scmp.le.s32.totalorder 1, %s13
      %p116 = scmp.lt.s32.totalorder %s13, 3
      %p117 = pnand %p115, %p116
      %p118 = pneg %p117
      // Predicated region
      $region9: #{tpu_custom_call.1} parent=5 // pred_check
        _
      $region10: #{tpu_custom_call.1} parent=5 // pred_check_branch
        %120 = sbr.rel (%p117) target = $region12
      $region11: #{tpu_custom_call.1} parent=5 // pred_region
        %s121 = ssub.s32 %s13, 1
        // Predicated region
        $region13: #{tpu_custom_call.1} parent=11 // pred_check
          %p122 = pneg %p60
        $region14: #{tpu_custom_call.1} parent=11 // pred_check_branch
          %124 = sbr.rel (%p122) target = $region16
        $region15: #{tpu_custom_call.1} parent=11 // pred_region
          %s126 = ssub.s32 1536, 1536
          %127 = vsyncadd [#allocation3], %s126
          %s128 = sshll.u32 [#allocation2], 4
          %s129 = int_to_ptr.vmem [resolvable:$true] %s128
          %134 = dma.hbm_to_vmem [thread:$0]  %s1, 1536, %s129, [#allocation3], 128, 128, 8
        $region16: #{tpu_custom_call.1} parent=11 // pred_fallthru
          _
        // Predicated region
        $region17: #{tpu_custom_call.1} parent=11 // pred_check
          %p135 = pneg %p81
        $region18: #{tpu_custom_call.1} parent=11 // pred_check_branch
          %137 = sbr.rel (%p135) target = $region20
        $region19: #{tpu_custom_call.1} parent=11 // pred_region
          _
        $region20: #{tpu_custom_call.1} parent=11 // pred_fallthru
          _
      $region12: #{tpu_custom_call.1} parent=5 // pred_fallthru
        _
      %p138 = scmp.lt.s32.totalorder %s13, 2
      // Predicated region
      $region21: #{tpu_custom_call.1} parent=5 // pred_check
        %p139 = pneg %p138
      $region22: #{tpu_custom_call.1} parent=5 // pred_check_branch
        %141 = sbr.rel (%p139) target = $region24
      $region23: #{tpu_custom_call.1} parent=5 // pred_region
        // Predicated region
        $region25: #{tpu_custom_call.1} parent=23 // pred_check
          %p142 = pneg %p33
        $region26: #{tpu_custom_call.1} parent=23 // pred_check_branch
          %144 = sbr.rel (%p142) target = $region28
        $region27: #{tpu_custom_call.1} parent=23 // pred_region
          %p145 = scmp.lt.s32.totalorder %s13, 1
          %s146 = scalar_select %p145, %s13, 1
          %s147 = smul.addr %s146, 3
          %s148 = smul.addr %s147, 8
          %s149 = scalar_lea.vmem %s0, %s148
        $region28: #{tpu_custom_call.1} parent=23 // pred_fallthru
          _
      $region24: #{tpu_custom_call.1} parent=5 // pred_fallthru
        _
      %p150 = scmp.le.s32.totalorder 1, %s13
      %p151 = scmp.lt.s32.totalorder %s13, 3
      %p152 = pnand %p150, %p151
      %p153 = pneg %p152
      // Predicated region
      $region29: #{tpu_custom_call.1} parent=5 // pred_check
        _
      $region30: #{tpu_custom_call.1} parent=5 // pred_check_branch
        %155 = sbr.rel (%p152) target = $region32
      $region31: #{tpu_custom_call.1} parent=5 // pred_region
        %s156 = ssub.s32 %s13, 1
        // Predicated region
        $region33: #{tpu_custom_call.1} parent=31 // pred_check
          %p157 = pneg %p60
        $region34: #{tpu_custom_call.1} parent=31 // pred_check_branch
          %159 = sbr.rel (%p157) target = $region36
        $region35: #{tpu_custom_call.1} parent=31 // pred_region
          %160 = dma.done [#allocation3], 1536
        $region36: #{tpu_custom_call.1} parent=31 // pred_fallthru
          _
        %p161 = scmp.lt.s32.totalorder %s18, 1
        %s162 = scalar_select %p161, %s18, 1
        %s163 = smul.addr %s162, 3
        %s164 = smul.addr %s163, 8
        %s165 = scalar_lea.vmem %s0, %s164
        %p166 = pneg %p39
        %p167 = pneg %p36
        %p168 = pneg %p60
        %p169 = pneg %p57
        %p170 = pneg %p81
        %p171 = pneg %p78
        %p172 = pneg %p107
        %p173 = pneg %p104
        %s174 = sand.u32 %s94, 1
        %s175 = scalar_lea.sflag [#allocation4], %s174
        %s176 = sand.u32 %s94, 1
        %s177 = smul.addr %s176, 16
        %s178 = scalar_lea.vmem [#allocation5], %s177
        %p179 = scmp.lt.s32.totalorder %s18, 1
        %s180 = scalar_select %p179, %s18, 1
        %s181 = smul.addr %s180, 3
        %s182 = smul.addr %s181, 8
        %s183 = scalar_lea.vmem %s0, %s182
        %v184 = vld [vmem:[%s183] sm:$0xff]
        %v185 = vld [vmem:[%s183 + $0x8] sm:$0xff]
        %v186 = vld [vmem:[%s183 + $0x10] sm:$0x3]
        %vm190 = vcmask 1046528
        %v191 = vrot.slane %v184, 1
        %v192 = vrot.slane %v185, 1
        %v193 = vsel %vm190, %v191, %v192
        %v194 = vrot.slane %v186, 1
        %v195 = vsel %vm190, %v192, %v194
        %196 = vrot.lane.b32.xlu0 %v193, 32
        %v197 = vpop.permute.xlu0 %196
        %198 = vrot.lane.b32.xlu0 %v195, 32
        %v199 = vpop.permute.xlu0 %198
        %vm202 = vcmask 1045504
        %v203 = vrot.slane %v184, 2
        %v204 = vrot.slane %v185, 2
        %v205 = vsel %vm202, %v203, %v204
        %v206 = vrot.slane %v186, 2
        %v207 = vsel %vm202, %v204, %v206
        %208 = vrot.lane.b32.xlu0 %v205, 64
        %v209 = vpop.permute.xlu0 %208
        %210 = vrot.lane.b32.xlu0 %v207, 64
        %v211 = vpop.permute.xlu0 %210
        %vm214 = vcmask 261120
        %v215 = vsel %vm214, %v184, %v197
        %v216 = vsel %vm214, %v185, %v199
        %vm217 = vcmask 523264
        %v218 = vsel %vm217, %v215, %v209
        %v219 = vsel %vm217, %v216, %v211
        %v220 = vld [vmem:[#allocation2] sm:$0xff]
        %v221 = vld [vmem:[#allocation2 + $0x8] sm:$0xff]
        %v222 = vld [vmem:[#allocation2 + $0x10] sm:$0xff]
        %v223 = vld [vmem:[#allocation2 + $0x18] sm:$0xff]
        %v224 = vld [vmem:[#allocation2 + $0x20] sm:$0xff]
        %v225 = vld [vmem:[#allocation2 + $0x28] sm:$0xff]
        %v226 = vld [vmem:[#allocation2 + $0x30] sm:$0xff]
        %v227 = vld [vmem:[#allocation2 + $0x38] sm:$0xff]
        %v228 = vld [vmem:[#allocation2 + $0x40] sm:$0xff]
        %v229 = vld [vmem:[#allocation2 + $0x48] sm:$0xff]
        %v230 = vld [vmem:[#allocation2 + $0x50] sm:$0xff]
        %v231 = vld [vmem:[#allocation2 + $0x58] sm:$0xff]
        %v232 = vld [vmem:[%s2] sm:$0x1]
        %v234 = vlaneseq
        %v235 = vshrl.u32 %v234, 7
        %v236 = vsub.s32 0, %v235
        %v237 = vrot.slane %v232, %v236
        %vm239 = vcmask 785408
        %v241 = vsel %vm239, %v218, 0
        %v244 = vsel %vm239, %v219, 0
        %246 = vmatprep.subr.mxu0 0.0
        %247 = vmatpush1.msra.mxu0 %v220
        %248 = vmatprep.subr.mxu0 0.0
        %249 = vmatpush1.msra.mxu0 %v221
        %250 = vmatprep.subr.mxu0 0.0
        %251 = vmatpush1.msra.mxu0 %v222
        %252 = vmatprep.subr.mxu0 0.0
        %253 = vmatpush1.msra.mxu0 %v223
        %254 = vmatprep.subr.mxu0 0.0
        %255 = vmatpush1.msra.mxu0 %v224
        %256 = vmatprep.subr.mxu0 0.0
        %257 = vmatpush1.msra.mxu0 %v225
        %258 = vmatprep.subr.mxu0 0.0
        %259 = vmatpush1.msra.mxu0 %v226
        %260 = vmatprep.subr.mxu0 0.0
        %261 = vmatpush1.msra.mxu0 %v227
        %262 = vmatprep.subr.mxu0 0.0
        %263 = vmatpush1.msra.mxu0 %v228
        %264 = vmatprep.subr.mxu0 0.0
        %265 = vmatpush1.msra.mxu0 %v229
        %266 = vmatprep.subr.mxu0 0.0
        %267 = vmatpush1.msra.mxu0 %v230
        %268 = vmatprep.subr.mxu0 0.0
        %269 = vmatpush1.msra.mxu0 %v231
        %270 = vmatprep.subr.mxu0 0.0
        %271 = vmatpush1.msra.mxu0 0.0
        %272 = vmatprep.subr.mxu0 0.0
        %273 = vmatpush1.msra.mxu0 0.0
        %274 = vmatprep.subr.mxu0 0.0
        %275 = vmatpush1.msra.mxu0 0.0
        %276 = vmatprep.subr.mxu0 0.0
        %277 = vmatpush1.msra.mxu0 0.0
        %278 = vmatprep.subr.mxu0 0.0
        %279 = vmatpush1.msra.mxu0 0.0
        %280 = vmatprep.subr.mxu0 0.0
        %281 = vmatpush1.msra.mxu0 0.0
        %282 = vmatprep.subr.mxu0 0.0
        %283 = vmatpush1.msra.mxu0 0.0
        %284 = vmatprep.subr.mxu0 0.0
        %285 = vmatpush1.msra.mxu0 0.0
        %286 = vmatprep.subr.mxu0 0.0
        %287 = vmatpush1.msra.mxu0 0.0
        %288 = vmatprep.subr.mxu0 0.0
        %289 = vmatpush1.msra.mxu0 0.0
        %290 = vmatprep.subr.mxu0 0.0
        %291 = vmatpush1.msra.mxu0 0.0
        %292 = vmatprep.subr.mxu0 0.0
        %293 = vmatpush1.msra.mxu0 0.0
        %294 = vmatprep.subr.mxu0 0.0
        %295 = vmatpush1.msra.mxu0 0.0
        %296 = vmatprep.subr.mxu0 0.0
        %297 = vmatpush1.msra.mxu0 0.0
        %298 = vmatprep.subr.mxu0 0.0
        %299 = vmatpush1.msra.mxu0 0.0
        %300 = vmatprep.subr.mxu0 0.0
        %301 = vmatpush1.msra.mxu0 0.0
        %302 = vmatprep.subr.mxu0 0.0
        %303 = vmatpush1.msra.mxu0 0.0
        %304 = vmatprep.subr.mxu0 0.0
        %305 = vmatpush1.msra.mxu0 0.0
        %306 = vmatprep.subr.mxu0 0.0
        %307 = vmatpush1.msra.mxu0 0.0
        %308 = vmatprep.subr.mxu0 0.0
        %309 = vmatpush1.msra.mxu0 0.0
        %310 = vmatprep.mubr.f32.mxu0 0.0
        %311 = vmatmul.mubr.f32.gmra.mrb[0].mxu0 %v241
        %v312 = vpop.f32.mrb[0].mxu0
        %v313 = vadd.f32 %v237, %v312
        %v314 = vpop.f32.mrb[0].mxu0
        %315 = vmatprep.mubr.f32.mxu0 0.0
        %316 = vmatmul.mubr.f32.gmra.mrb[0].mxu0 %v244
        %v317 = vpop.f32.mrb[0].mxu0
        %v318 = vadd.f32 %v237, %v317
        %v319 = vpop.f32.mrb[0].mxu0
        %320 = vdwg.mxu0
        %v321 = vmax.f32 %v313, 0.0
        %v322 = vmax.f32 %v318, 0.0
        %323 = vst [vmem:[%s178] sm:$0xff] %v321
        %324 = vst [vmem:[%s178 + $0x8] sm:$0xff] %v322
        %s325 = sand.u32 %s94, 1
        %s326 = scalar_lea.sflag [#allocation4], %s325
        %s327 = sand.u32 %s94, 1
        %s328 = smul.addr %s327, 16
        %s329 = scalar_lea.vmem [#allocation5], %s328
        // Predicated region
        $region37: #{tpu_custom_call.1} parent=31 // pred_check
          %p330 = pneg %p104
        $region38: #{tpu_custom_call.1} parent=31 // pred_check_branch
          %332 = sbr.rel (%p330) target = $region40
        $region39: #{tpu_custom_call.1} parent=31 // pred_region
          %s334 = ssub.s32 256, 256
          %335 = vsyncadd %s326, %s334
          %s336 = smul.addr %s18, 2
          %s337 = smul.addr %s336, 128
          %s338 = scalar_lea.hbm %s3, %s337
          %s339 = sshll.u32 %s329, 4
          %s340 = int_to_ptr.vmem [resolvable:$true] %s339
          %345 = dma.vmem_to_hbm [thread:$0]  %s340, 256, %s338, %s326, 128, 128, 8
        $region40: #{tpu_custom_call.1} parent=31 // pred_fallthru
          _
      $region32: #{tpu_custom_call.1} parent=5 // pred_fallthru
        _
      %p346 = scmp.le.s32.totalorder 2, %s13
      // Predicated region
      $region41: #{tpu_custom_call.1} parent=5 // pred_check
        %p347 = pneg %p346
      $region42: #{tpu_custom_call.1} parent=5 // pred_check_branch
        %349 = sbr.rel (%p347) target = $region44
      $region43: #{tpu_custom_call.1} parent=5 // pred_region
        %s350 = ssub.s32 %s13, 2
        // Predicated region
        $region45: #{tpu_custom_call.1} parent=43 // pred_check
          %p351 = pneg %p110
        $region46: #{tpu_custom_call.1} parent=43 // pred_check_branch
          %353 = sbr.rel (%p351) target = $region48
        $region47: #{tpu_custom_call.1} parent=43 // pred_region
          %s354 = sand.u32 %s95, 1
          %s355 = scalar_lea.sflag [#allocation4], %s354
          %s356 = sand.u32 %s95, 1
          %s357 = smul.addr %s356, 16
          %s358 = scalar_lea.vmem [#allocation5], %s357
          %359 = dma.done %s355, 256
        $region48: #{tpu_custom_call.1} parent=43 // pred_fallthru
          _
      $region44: #{tpu_custom_call.1} parent=5 // pred_fallthru
        _
    $region6: #{tpu_custom_call.1} parent=1 // loop_footer
      %s17 = sadd.s32 1, %s13
    $region7: #{tpu_custom_call.1} parent=1 // loop_footer_branch
      %12 = sbr.rel target = $region3
    $region8: #{tpu_custom_call.1} parent=1 // loop_exit
      _
    %360 = vsyncpa [#allocation3], 1
    %s361 = scalar_lea.sflag [#allocation3], 1
    %362 = vsyncpa %s361, 1
    %363 = vsyncpa [#allocation4], 1
    %s364 = scalar_lea.sflag [#allocation4], 1
    %365 = vsyncpa %s364, 1

</llo_original>
